<compile_context>
chip_gen: v6e
topology: v6e:2x2x1
jax: 0.10.0
libtpu: 0.0.40
codegen_flags: <defaults>
</compile_context>

<pallas_src>
import math
import jax
import jax.numpy as jnp
from jax.experimental import pallas as pl
from jax.experimental.pallas import tpu as pltpu


# ---------------------------------------------------------------------------
# Parameter init (mirrors ExponentialModulation.__init__)
# ---------------------------------------------------------------------------
def _make_deltas(d_model, fast_decay_pct=0.3, slow_decay_pct=1.5, target=0.01):
    max_decay = math.log(target) / fast_decay_pct
    min_decay = math.log(target) / slow_decay_pct
    deltas = jnp.linspace(min_decay, max_decay, d_model, dtype=jnp.float32)
    return deltas[None, :]  # (1, D); torch's leading (1, 1) dims are broadcast dims


# ---------------------------------------------------------------------------
# Generation-conditional tuning knobs
# ---------------------------------------------------------------------------
def _gen_config():
    kind = ""
    try:
        kind = jax.devices()[0].device_kind.lower()
    except Exception:
        pass
    if "7" in kind:
        # v7x: 2 TC/chip, 64 MiB physical / 32 MiB scoped VMEM, 3.2 TB/s HBM.
        return dict(budget=24 << 20, vmem_limit=32 << 20,
                    core_parallel=True, min_l_tiles=4, bf16_scratch=True)
    if "v6" in kind:
        # v6e: 128 MiB physical / 32 MiB scoped VMEM.
        return dict(budget=26 << 20, vmem_limit=32 << 20,
                    core_parallel=False, min_l_tiles=1, bf16_scratch=True)
    # v5e / unknown: 16 MiB scoped default, no bf16 VPU/EUP path -> conservative.
    return dict(budget=12 << 20, vmem_limit=None,
                core_parallel=False, min_l_tiles=1, bf16_scratch=False)


def _choose_tl(L, D, x_itemsize, scratch_itemsize, budget_bytes):
    """Largest L-tile keeping per-step VMEM (2x dbuf in + 2x dbuf out + scratch)
    under `budget_bytes`.  Sublane dim kept a multiple of 8."""
    per_row = D * (4 * x_itemsize + scratch_itemsize)
    tl = budget_bytes // per_row
    if tl >= L:
        return L
    return max(8, (tl // 8) * 8)


# ---------------------------------------------------------------------------
# Kernels
# ---------------------------------------------------------------------------
def _make_kernel(shift, has_scratch):
    shift = float(shift)

    def modulation(t_tile, nad_tile):
        mod = jnp.exp(t_tile * nad_tile)          # (TL,1)*(1,D) -> (TL,D), f32 EUP
        if shift != 0.0:                          # trace-time specialization
            mod = mod + jnp.float32(shift)
        return mod

    if has_scratch:
        def kernel(t_ref, nad_ref, x_ref, o_ref, decay_ref):
            # Inner grid axis (1) is batch: compute the (TL, D) modulation once
            # per L-tile, reuse it for the remaining B-1 batch steps.
            @pl.when(pl.program_id(1) == 0)
            def _compute_decay():
                decay_ref[...] = modulation(t_ref[...], nad_ref[...]).astype(
                    decay_ref.dtype)
            o_ref[...] = (x_ref[...] * decay_ref[...]).astype(o_ref.dtype)
    else:
        def kernel(t_ref, nad_ref, x_ref, o_ref):
            mod = modulation(t_ref[...], nad_ref[...])
            o_ref[...] = (x_ref[...] * mod).astype(o_ref.dtype)

    return kernel


# ---------------------------------------------------------------------------
# Wrapper
# ---------------------------------------------------------------------------
def exponential_modulation(t, x, deltas, *, modulate=True, shift=0.0, max_tl=None):
    """t: (L, 1), x: (B, L, D), deltas: (1, D) -> (B, L, D) (same dtype as x)."""
    if not modulate:
        return x

    B, L, D = x.shape
    x_itemsize = jnp.dtype(x.dtype).itemsize
    cfg = _gen_config()

    t2 = jnp.asarray(t, jnp.float32).reshape(L, 1)
    # Hoist abs/negate out of the hot loop: kernel only sees -|deltas|.
    nad = (-jnp.abs(jnp.asarray(deltas, jnp.float32))).reshape(1, D)

    # Lane-dense last dim: pad D to a multiple of 128 so stores are unmasked
    # vst (padding lanes of -|deltas| are 0 -> exp = 1, output pad sliced off).
    pad = (-D) % 128
    Dp = D + pad
    if pad:
        x = jnp.pad(x, ((0, 0), (0, 0), (0, pad)))
        nad = jnp.pad(nad, ((0, 0), (0, pad)))

    # B == 1: skip the decay scratch entirely (no reuse to be had).
    use_scratch = B > 1
    if use_scratch:
        scratch_dtype = (x.dtype if (cfg["bf16_scratch"] and x.dtype == jnp.bfloat16)
                         else jnp.float32)
        scratch_itemsize = jnp.dtype(scratch_dtype).itemsize
    else:
        scratch_dtype = None
        scratch_itemsize = 0

    tl = _choose_tl(L, Dp, x_itemsize, scratch_itemsize, cfg["budget"])
    if cfg["min_l_tiles"] > 1:
        # v7x: cap tl so both TensorCores get >= 2 L tiles each.
        cap = max(8, ((pl.cdiv(L, cfg["min_l_tiles"]) + 7) // 8) * 8)
        tl = min(tl, cap)
    if max_tl is not None:
        tl = min(tl, max(8, int(max_tl)))
    tl = min(tl, L)
    num_l = pl.cdiv(L, tl)

    l_sem = (pltpu.CORE_PARALLEL if (cfg["core_parallel"] and num_l >= 2)
             else pltpu.PARALLEL)

    cost = pl.CostEstimate(
        flops=2 * B * L * Dp,                     # mul + add
        transcendentals=L * Dp,                   # exp computed once per L-tile
        bytes_accessed=2 * B * L * Dp * x_itemsize + (L + Dp) * 4,
    )

    if use_scratch:
        grid = (num_l, B)                         # B innermost -> decay reuse
        x_spec = pl.BlockSpec((pl.Squeezed(), tl, Dp), lambda l, b: (b, l, 0))
        in_specs = [
            pl.BlockSpec((tl, 1), lambda l, b: (l, 0)),   # t, advances with l
            pl.BlockSpec((1, Dp), lambda l, b: (0, 0)),   # -|deltas|, constant
            x_spec,
        ]
        scratch_shapes = [pltpu.VMEM((tl, Dp), scratch_dtype)]
        dim_sem = (l_sem, pltpu.ARBITRARY)
    else:
        grid = (num_l,)
        x_spec = pl.BlockSpec((pl.Squeezed(), tl, Dp), lambda l: (0, l, 0))
        in_specs = [
            pl.BlockSpec((tl, 1), lambda l: (l, 0)),
            pl.BlockSpec((1, Dp), lambda l: (0, 0)),
            x_spec,
        ]
        scratch_shapes = []
        dim_sem = (l_sem,)

    out = pl.pallas_call(
        _make_kernel(shift, use_scratch),
        out_shape=jax.ShapeDtypeStruct((B, L, Dp), x.dtype),
        grid_spec=pltpu.PrefetchScalarGridSpec(
            num_scalar_prefetch=0,
            grid=grid,
            in_specs=in_specs,
            out_specs=x_spec,
            scratch_shapes=scratch_shapes,
        ),
        compiler_params=pltpu.CompilerParams(
            dimension_semantics=dim_sem,
            vmem_limit_bytes=cfg["vmem_limit"]),
        cost_estimate=cost,
    )(t2, nad, x)

    if pad:
        out = out[..., :D]
    return out


# ---------------------------------------------------------------------------
# Pure-JAX reference + demo
# ---------------------------------------------------------------------------
def _reference(t, x, deltas, *, modulate=True, shift=0.0):
    if not modulate:
        return x
    decay = jnp.exp(-jnp.asarray(t, jnp.float32) * jnp.abs(jnp.asarray(deltas, jnp.float32)))
    return x * (decay + shift)


if __name__ == "__main__":
    B, L, D = 2, 256, 128                          # small, lane-dense demo shapes
    key = jax.random.PRNGKey(0)

    t = jnp.linspace(0.0, 1.0, L, dtype=jnp.float32)[:, None]   # (L, 1)
    x = jax.random.normal(key, (B, L, D), dtype=jnp.float32)    # (B, L, D)
    deltas = _make_deltas(D)                                     # (1, D)

    # max_tl=128 forces >1 L-tile so the l-advancing index_maps are exercised.
    out0 = jax.block_until_ready(
        exponential_modulation(t, x, deltas, shift=0.0, max_tl=128))
    ref0 = _reference(t, x, deltas, shift=0.0)
    assert out0.shape == x.shape and out0.dtype == x.dtype
    assert jnp.allclose(out0, ref0, atol=1e-6, rtol=1e-6)

    # Non-zero shift branch.
    out1 = jax.block_until_ready(
        exponential_modulation(t, x, deltas, shift=0.5, max_tl=128))
    assert jnp.allclose(out1, _reference(t, x, deltas, shift=0.5), atol=1e-6, rtol=1e-6)

    # B == 1 specialization (no scratch, 1-D grid).
    x1 = jax.random.normal(jax.random.PRNGKey(1), (1, L, D), dtype=jnp.float32)
    out2 = jax.block_until_ready(
        exponential_modulation(t, x1, deltas, shift=0.0, max_tl=64))
    assert jnp.allclose(out2, _reference(t, x1, deltas, shift=0.0), atol=1e-6, rtol=1e-6)

    # Non-128-multiple d_model exercises the lane-padding path.
    Dn = 96
    xn = jax.random.normal(jax.random.PRNGKey(2), (B, L, Dn), dtype=jnp.float32)
    dn = _make_deltas(Dn)
    out3 = jax.block_until_ready(exponential_modulation(t, xn, dn, shift=0.25))
    assert out3.shape == (B, L, Dn)
    assert jnp.allclose(out3, _reference(t, xn, dn, shift=0.25), atol=1e-6, rtol=1e-6)

    # bf16 input (bf16 decay scratch on v6e/v7x, f32 scratch on v5e).
    xb = x.astype(jnp.bfloat16)
    outb = jax.block_until_ready(
        exponential_modulation(t, xb, deltas, shift=0.0, max_tl=128))
    refb = _reference(t, xb.astype(jnp.float32), deltas, shift=0.0)
    assert outb.dtype == jnp.bfloat16
    assert jnp.allclose(outb.astype(jnp.float32), refb, atol=5e-2, rtol=5e-2)

    # modulate=False passthrough.
    assert exponential_modulation(t, x, deltas, modulate=False) is x

    print("KERNEL_OK")
</pallas_src>

<mosaic_0001>
module attributes {stable_mosaic.version = 11 : i64} {
  func.func @kernel(%arg0: i32, %arg1: i32, %arg2: memref<128x1xf32, #tpu.memory_space<vmem>>, %arg3: memref<1x128xf32, #tpu.memory_space<vmem>>, %arg4: memref<1x128x128xf32, #tpu.memory_space<vmem>>, %arg5: memref<1x128x128xf32, #tpu.memory_space<vmem>>, %arg6: memref<128x128xf32, #tpu.memory_space<vmem>>) attributes {dimension_semantics = [#tpu.dimension_semantics<parallel>, #tpu.dimension_semantics<arbitrary>], iteration_bounds = array<i64: 2, 2>, scalar_prefetch = 0 : i64, scratch_operands = 1 : i64, tpu.core_type = #tpu.core_type<tc>, window_params = [{transform_indices = @transform_0, window_bounds = array<i64: 128, 1>}, {pipeline_mode = #tpu.pipeline_mode<synchronous>, transform_indices = @transform_1, window_bounds = array<i64: 1, 128>}, {transform_indices = @transform_2, window_bounds = array<i64: 1, 128, 128>}, {transform_indices = @transform_3, window_bounds = array<i64: 1, 128, 128>}]} {
    %c0_i32 = arith.constant 0 : i32
    %0 = arith.cmpi eq, %arg1, %c0_i32 : i32
    %1 = arith.extui %0 : i1 to i32
    %c0_i32_0 = arith.constant 0 : i32
    %2 = arith.cmpi ne, %1, %c0_i32_0 : i32
    scf.if %2 {
      %c0_8 = arith.constant 0 : index
      %c0_9 = arith.constant 0 : index
      %10 = vector.load %arg2[%c0_8, %c0_9] : memref<128x1xf32, #tpu.memory_space<vmem>>, vector<128x1xf32>
      %c0_10 = arith.constant 0 : index
      %c0_11 = arith.constant 0 : index
      %11 = vector.load %arg3[%c0_10, %c0_11] : memref<1x128xf32, #tpu.memory_space<vmem>>, vector<1x128xf32>
      %12 = vector.broadcast %10 : vector<128x1xf32> to vector<128x128xf32>
      %13 = vector.broadcast %11 : vector<1x128xf32> to vector<128x128xf32>
      %14 = arith.mulf %12, %13 : vector<128x128xf32>
      %15 = math.exp %14 : vector<128x128xf32>
      %c0_12 = arith.constant 0 : index
      %c0_13 = arith.constant 0 : index
      %16 = vector.load %arg6[%c0_12, %c0_13] : memref<128x128xf32, #tpu.memory_space<vmem>>, vector<128x128xf32>
      tpu.vector_store %arg6[%c0_12, %c0_13], %15 {strides = array<i32>} : memref<128x128xf32, #tpu.memory_space<vmem>>, vector<128x128xf32>,
    } else {
    }
    %c0 = arith.constant 0 : index
    %c0_1 = arith.constant 0 : index
    %c0_2 = arith.constant 0 : index
    %3 = vector.load %arg4[%c0, %c0_1, %c0_2] : memref<1x128x128xf32, #tpu.memory_space<vmem>>, vector<1x128x128xf32>
    %4 = vector.shape_cast %3 : vector<1x128x128xf32> to vector<128x128xf32>
    %c0_3 = arith.constant 0 : index
    %c0_4 = arith.constant 0 : index
    %5 = vector.load %arg6[%c0_3, %c0_4] : memref<128x128xf32, #tpu.memory_space<vmem>>, vector<128x128xf32>
    %6 = arith.mulf %4, %5 : vector<128x128xf32>
    %c0_5 = arith.constant 0 : index
    %c0_6 = arith.constant 0 : index
    %c0_7 = arith.constant 0 : index
    %7 = vector.load %arg5[%c0_5, %c0_6, %c0_7] : memref<1x128x128xf32, #tpu.memory_space<vmem>>, vector<1x128x128xf32>
    %8 = vector.shape_cast %7 : vector<1x128x128xf32> to vector<128x128xf32>
    %9 = vector.shape_cast %6 : vector<128x128xf32> to vector<1x128x128xf32>
    tpu.vector_store %arg5[%c0_5, %c0_6, %c0_7], %9 {strides = array<i32>} : memref<1x128x128xf32, #tpu.memory_space<vmem>>, vector<1x128x128xf32>,
    return
  }
  func.func @transform_0(%arg0: i32, %arg1: i32) -> (i32, i32) {
    %c0_i32 = arith.constant 0 : i32
    %c0_i32_0 = arith.constant 0 : i32
    return %arg0, %c0_i32 : i32, i32
  }
  func.func @transform_1(%arg0: i32, %arg1: i32) -> (i32, i32) {
    %c0_i32 = arith.constant 0 : i32
    %c0_i32_0 = arith.constant 0 : i32
    %c0_i32_1 = arith.constant 0 : i32
    return %c0_i32, %c0_i32_0 : i32, i32
  }
  func.func @transform_2(%arg0: i32, %arg1: i32) -> (i32, i32, i32) {
    %c0_i32 = arith.constant 0 : i32
    %c0_i32_0 = arith.constant 0 : i32
    return %arg1, %arg0, %c0_i32 : i32, i32, i32
  }
  func.func @transform_3(%arg0: i32, %arg1: i32) -> (i32, i32, i32) {
    %c0_i32 = arith.constant 0 : i32
    %c0_i32_0 = arith.constant 0 : i32
    return %arg1, %arg0, %c0_i32 : i32, i32, i32
  }
}

</mosaic_0001>

<llo_original>
// kernel: tpu_custom_call.1
$region0: #{tpu_custom_call.1}
  #allocation0 [shape = 'u32[]', space=smem, size = 0x4, offset = 0x4, fixed_abs, tag = 'smem constant byte address 0x4 - core index']
  #allocation1 [shape = 'u32[144,128]{1,0:T(1,128)}', space=vmem, size = 0x12000, scoped, tag = 'internal scratch']
  #allocation2 [shape = 'f32[128,128]{1,0:T(8,128)}', space=vmem, size = 0x10000, scoped, tag = 'scratch operand']
  %s0 = inlined_call_operand.vmem [shape: f32[256,1], index: 0, kind: input, shape index: {}]
  %s1 = inlined_call_operand.vmem [shape: f32[1,128], index: 1, kind: input, shape index: {}]
  %s2 = inlined_call_operand.hbm [shape: f32[2,256,128], index: 2, kind: input, shape index: {}]
  %s3 = inlined_call_operand.hbm [shape: f32[2,256,128], index: 3, kind: output, shape index: {}]
  %s4 = sld [smem:[#allocation0]]
  $region53: #{tpu_custom_call.1} parent=0
    _
  %s6 = ssub.s32 1, %s4
  %s7 = scalar_select 0, %s6, %s4
  $region1: #{tpu_custom_call.1} parent=0
    #allocation3 [shape = 'u8[131072]{0}', space=vmem, size = 0x20000, scoped, tag = 'input window, operand 2']
    #allocation4 [shape = 's32[2]{0}', space=sflag, size = 0x8, scoped, tag = 'scoped memory for tpu_custom_call.1']
    #allocation5 [shape = 's32[2]{0}', space=sflag, size = 0x8, scoped, tag = 'scoped memory for tpu_custom_call.1']
    #allocation6 [shape = 'u8[131072]{0}', space=vmem, size = 0x20000, scoped, tag = 'output window, operand 0']
    %8 = vsyncpa [#allocation4], 0
    %s9 = scalar_lea.sflag [#allocation4], 1
    %10 = vsyncpa %s9, 0
    %11 = vsyncpa [#allocation5], 0
    %s12 = scalar_lea.sflag [#allocation5], 1
    %13 = vsyncpa %s12, 0
    loop: start=0, step=1, limit=6
    $region2: #{tpu_custom_call.1} parent=1 // loop_pre_header
      _
    $region3: #{tpu_custom_call.1} parent=1 // loop_header
      %s15 = sphi 0, %s19
      %p16 = scmp.ge.s32.totalorder %s15, 6
      %s22 = sphi 0, %s34
      %s23 = sphi 0, %s30
      %s24 = sphi 0, %s22
      %s25 = sphi 0, %s23
      %s26 = sphi 0, %s24
      %s27 = sphi 0, %s25
      %s37 = sphi 0, %s39
      %s40 = sphi 0, %s37
      %s41 = sphi 0, %s40
      %s57 = sphi 0, %s41
      %s61 = sphi 0, %s61
      %s63 = sphi 0, %s61
      %s64 = sphi 0, %s63
      %s78 = sphi 0, %s64
      %s86 = sphi 0, %s88
      %s89 = sphi 0, %s86
      %s90 = sphi 0, %s89
      %s106 = sphi 0, %s90
      %s114 = sphi 0, %s116
      %s117 = sphi 0, %s114
      %s118 = sphi 0, %s117
      %s134 = sphi 0, %s118
    $region4: #{tpu_custom_call.1} parent=1 // loop_header_branch
      %18 = sbr.rel (%p16) target = $region8
    $region5: #{tpu_custom_call.1} parent=1 // loop_body
      %s20 = ssub.s32 %s15, 1
      %s21 = ssub.s32 %s15, 2
      %s28 = sadd.s32 1, %s23
      %p29 = scmp.ge.s32.totalorder %s28, 2
      %s30 = scalar_select %p29, 0, %s28
      %s31 = sadd.s32 1, %s22
      %s32 = scalar_select %p29, %s31, %s22
      %p33 = scmp.ge.s32.totalorder %s32, 2
      %s34 = scalar_select %p33, 0, %s32
      %s35 = ssub.s32 %s22, %s34
      %p36 = scmp.eq.s32.totalorder %s35, 0
      %s38 = sadd.s32 %s37, 1
      %s39 = scalar_select %p36, %s37, %s38
      %p42 = pneg %p36
      %p43 = scmp.eq.s32.totalorder %s15, 3
      %p44 = por %p42, %p43
      %p45 = scmp.ne.s32.totalorder %s37, %s40
      %p46 = scmp.eq.s32.totalorder %s15, 0
      %p47 = por %p45, %p46
      %p48 = scmp.ne.s32.totalorder %s37, %s40
      %p49 = scmp.eq.s32.totalorder %s20, 3
      %p50 = por %p48, %p49
      %p51 = scmp.ne.s32.totalorder %s40, %s41
      %p52 = scmp.eq.s32.totalorder %s20, 0
      %p53 = por %p51, %p52
      %p54 = scmp.ne.s32.totalorder %s40, %s41
      %p55 = scmp.eq.s32.totalorder %s21, 3
      %p56 = por %p54, %p55
      %p58 = scmp.ne.s32.totalorder %s41, %s57
      %p59 = scmp.eq.s32.totalorder %s21, 0
      %p60 = por %p58, %p59
      %s62 = sadd.s32 %s61, 1
      %p65 = scmp.eq.s32.totalorder %s15, 3
      %p66 = scmp.ne.s32.totalorder %s61, %s63
      %p67 = scmp.eq.s32.totalorder %s15, 0
      %p68 = por %p66, %p67
      %p69 = scmp.ne.s32.totalorder %s61, %s63
      %p70 = scmp.eq.s32.totalorder %s20, 3
      %p71 = por %p69, %p70
      %p72 = scmp.ne.s32.totalorder %s63, %s64
      %p73 = scmp.eq.s32.totalorder %s20, 0
      %p74 = por %p72, %p73
      %p75 = scmp.ne.s32.totalorder %s63, %s64
      %p76 = scmp.eq.s32.totalorder %s21, 3
      %p77 = por %p75, %p76
      %p79 = scmp.ne.s32.totalorder %s64, %s78
      %p80 = scmp.eq.s32.totalorder %s21, 0
      %p81 = por %p79, %p80
      %s82 = ssub.s32 %s23, %s30
      %s83 = ssub.s32 %s22, %s34
      %s84 = sor.u32 %s82, %s83
      %p85 = scmp.eq.s32.totalorder %s84, 0
      %s87 = sadd.s32 %s86, 1
      %s88 = scalar_select %p85, %s86, %s87
      %p91 = pneg %p85
      %p92 = scmp.eq.s32.totalorder %s15, 3
      %p93 = por %p91, %p92
      %p94 = scmp.ne.s32.totalorder %s86, %s89
      %p95 = scmp.eq.s32.totalorder %s15, 0
      %p96 = por %p94, %p95
      %p97 = scmp.ne.s32.totalorder %s86, %s89
      %p98 = scmp.eq.s32.totalorder %s20, 3
      %p99 = por %p97, %p98
      %p100 = scmp.ne.s32.totalorder %s89, %s90
      %p101 = scmp.eq.s32.totalorder %s20, 0
      %p102 = por %p100, %p101
      %p103 = scmp.ne.s32.totalorder %s89, %s90
      %p104 = scmp.eq.s32.totalorder %s21, 3
      %p105 = por %p103, %p104
      %p107 = scmp.ne.s32.totalorder %s90, %s106
      %p108 = scmp.eq.s32.totalorder %s21, 0
      %p109 = por %p107, %p108
      %s110 = ssub.s32 %s23, %s30
      %s111 = ssub.s32 %s22, %s34
      %s112 = sor.u32 %s110, %s111
      %p113 = scmp.eq.s32.totalorder %s112, 0
      %s115 = sadd.s32 %s114, 1
      %s116 = scalar_select %p113, %s114, %s115
      %p119 = pneg %p113
      %p120 = scmp.eq.s32.totalorder %s15, 3
      %p121 = por %p119, %p120
      %p122 = scmp.ne.s32.totalorder %s114, %s117
      %p123 = scmp.eq.s32.totalorder %s15, 0
      %p124 = por %p122, %p123
      %p125 = scmp.ne.s32.totalorder %s114, %s117
      %p126 = scmp.eq.s32.totalorder %s20, 3
      %p127 = por %p125, %p126
      %p128 = scmp.ne.s32.totalorder %s117, %s118
      %p129 = scmp.eq.s32.totalorder %s20, 0
      %p130 = por %p128, %p129
      %p131 = scmp.ne.s32.totalorder %s117, %s118
      %p132 = scmp.eq.s32.totalorder %s21, 3
      %p133 = por %p131, %p132
      %p135 = scmp.ne.s32.totalorder %s118, %s134
      %p136 = scmp.eq.s32.totalorder %s21, 0
      %p137 = por %p135, %p136
      %p138 = scmp.le.s32.totalorder 1, %s15
      %p139 = scmp.lt.s32.totalorder %s15, 5
      %p140 = pnand %p138, %p139
      %p141 = pneg %p140
      // Predicated region
      $region9: #{tpu_custom_call.1} parent=5 // pred_check
        _
      $region10: #{tpu_custom_call.1} parent=5 // pred_check_branch
        %143 = sbr.rel (%p140) target = $region12
      $region11: #{tpu_custom_call.1} parent=5 // pred_region
        %s144 = ssub.s32 %s15, 1
        // Predicated region
        $region13: #{tpu_custom_call.1} parent=11 // pred_check
          %p145 = pneg %p74
        $region14: #{tpu_custom_call.1} parent=11 // pred_check_branch
          %147 = sbr.rel (%p145) target = $region16
        $region15: #{tpu_custom_call.1} parent=11 // pred_region
          _
        $region16: #{tpu_custom_call.1} parent=11 // pred_fallthru
          _
      $region12: #{tpu_custom_call.1} parent=5 // pred_fallthru
        _
      %p148 = scmp.lt.s32.totalorder %s15, 4
      // Predicated region
      $region17: #{tpu_custom_call.1} parent=5 // pred_check
        %p149 = pneg %p148
      $region18: #{tpu_custom_call.1} parent=5 // pred_check_branch
        %151 = sbr.rel (%p149) target = $region20
      $region19: #{tpu_custom_call.1} parent=5 // pred_region
        // Predicated region
        $region21: #{tpu_custom_call.1} parent=19 // pred_check
          %p152 = pneg %p47
        $region22: #{tpu_custom_call.1} parent=19 // pred_check_branch
          %154 = sbr.rel (%p152) target = $region24
        $region23: #{tpu_custom_call.1} parent=19 // pred_region
          %s155 = smul.u32 16, %s22
          %p156 = scmp.lt.s32.totalorder %s155, 31
          %s157 = scalar_select %p156, %s155, 31
          %s158 = smul.addr %s157, 8
          %s159 = scalar_lea.vmem %s0, %s158
          %s160 = smul.u32 16, %s22
        $region24: #{tpu_custom_call.1} parent=19 // pred_fallthru
          _
        // Predicated region
        $region25: #{tpu_custom_call.1} parent=19 // pred_check
          %p161 = pneg %p96
        $region26: #{tpu_custom_call.1} parent=19 // pred_check_branch
          %163 = sbr.rel (%p161) target = $region28
        $region27: #{tpu_custom_call.1} parent=19 // pred_region
          %s164 = sand.u32 %s86, 1
          %s165 = scalar_lea.sflag [#allocation4], %s164
          %s166 = sand.u32 %s86, 1
          %s167 = smul.addr %s166, 128
          %s168 = scalar_lea.vmem [#allocation3], %s167
          %s169 = smul.u32 16, %s22
          %s171 = ssub.s32 2048, 2048
          %172 = vsyncadd %s165, %s171
          %s173 = smul.addr %s23, 32
          %s174 = sadd.s32 %s169, %s173
          %s175 = smul.addr %s174, 128
          %s176 = scalar_lea.hbm %s2, %s175
          %s177 = sshll.u32 %s168, 4
          %s178 = int_to_ptr.vmem [resolvable:$true] %s177
          %183 = dma.hbm_to_vmem [thread:$0]  %s176, 2048, %s178, %s165, 128, 128, 8
        $region28: #{tpu_custom_call.1} parent=19 // pred_fallthru
          _
      $region20: #{tpu_custom_call.1} parent=5 // pred_fallthru
        _
      %p184 = scmp.le.s32.totalorder 1, %s15
      %p185 = scmp.lt.s32.totalorder %s15, 5
      %p186 = pnand %p184, %p185
      %p187 = pneg %p186
      // Predicated region
      $region29: #{tpu_custom_call.1} parent=5 // pred_check
        _
      $region30: #{tpu_custom_call.1} parent=5 // pred_check_branch
        %189 = sbr.rel (%p186) target = $region32
      $region31: #{tpu_custom_call.1} parent=5 // pred_region
        %s190 = ssub.s32 %s15, 1
        %s191 = sand.u32 %s89, 1
        %s192 = scalar_lea.sflag [#allocation4], %s191
        %s193 = sand.u32 %s89, 1
        %s194 = smul.addr %s193, 128
        %s195 = scalar_lea.vmem [#allocation3], %s194
        // Predicated region
        $region33: #{tpu_custom_call.1} parent=31 // pred_check
          %p196 = pneg %p102
        $region34: #{tpu_custom_call.1} parent=31 // pred_check_branch
          %198 = sbr.rel (%p196) target = $region36
        $region35: #{tpu_custom_call.1} parent=31 // pred_region
          %199 = dma.done %s192, 2048
        $region36: #{tpu_custom_call.1} parent=31 // pred_fallthru
          _
        %s200 = smul.u32 16, %s24
        %p201 = scmp.lt.s32.totalorder %s200, 31
        %s202 = scalar_select %p201, %s200, 31
        %s203 = smul.addr %s202, 8
        %s204 = scalar_lea.vmem %s0, %s203
        %p205 = pneg %p53
        %p206 = pneg %p50
        %p207 = pneg %p74
        %p208 = pneg %p71
        %s209 = sand.u32 %s89, 1
        %s210 = scalar_lea.sflag [#allocation4], %s209
        %s211 = sand.u32 %s89, 1
        %s212 = smul.addr %s211, 128
        %s213 = scalar_lea.vmem [#allocation3], %s212
        %p214 = pneg %p102
        %p215 = pneg %p99
        %p216 = pneg %p130
        %p217 = pneg %p127
        %s218 = sand.u32 %s117, 1
        %s219 = scalar_lea.sflag [#allocation5], %s218
        %s220 = sand.u32 %s117, 1
        %s221 = smul.addr %s220, 128
        %s222 = scalar_lea.vmem [#allocation6], %s221
        %s223 = smul.u32 16, %s24
        %p224 = scmp.lt.s32.totalorder %s223, 31
        %s225 = scalar_select %p224, %s223, 31
        %s226 = smul.addr %s225, 8
        %s227 = scalar_lea.vmem %s0, %s226
        %s228 = smul.u32 16, %s24
        %s229 = smul.u32 16, %s24
        %s230 = smul.u32 16, %s24
        %p231 = scmp.eq.s32.totalorder %s25, 0
        // Predicated region
        $region37: #{tpu_custom_call.1} parent=31 // pred_check
          %p232 = pneg %p231
        $region38: #{tpu_custom_call.1} parent=31 // pred_check_branch
          %234 = sbr.rel (%p232) target = $region40
        $region39: #{tpu_custom_call.1} parent=31 // pred_region
          %v235 = vld [vmem:[%s227] sm:$0xff]
          %v236 = vld [vmem:[%s227 + $0x8] sm:$0xff]
          %v237 = vld [vmem:[%s227 + $0x10] sm:$0xff]
          %v238 = vld [vmem:[%s227 + $0x18] sm:$0xff]
          %v239 = vld [vmem:[%s227 + $0x20] sm:$0xff]
          %v240 = vld [vmem:[%s227 + $0x28] sm:$0xff]
          %v241 = vld [vmem:[%s227 + $0x30] sm:$0xff]
          %v242 = vld [vmem:[%s227 + $0x38] sm:$0xff]
          %v243 = vld [vmem:[%s227 + $0x40] sm:$0xff]
          %v244 = vld [vmem:[%s227 + $0x48] sm:$0xff]
          %v245 = vld [vmem:[%s227 + $0x50] sm:$0xff]
          %v246 = vld [vmem:[%s227 + $0x58] sm:$0xff]
          %v247 = vld [vmem:[%s227 + $0x60] sm:$0xff]
          %v248 = vld [vmem:[%s227 + $0x68] sm:$0xff]
          %v249 = vld [vmem:[%s227 + $0x70] sm:$0xff]
          %v250 = vld [vmem:[%s227 + $0x78] sm:$0xff]
          %v251 = vld [vmem:[%s1] sm:$0x1]
          %253 = vset.pattern.permute.xlu0 0
          %254 = vperm.xlu0 %253, %v235
          %v255 = vpop.permute.xlu0 %254
          %258 = vset.pattern.permute.xlu0 0
          %259 = vperm.xlu0 %258, %v236
          %v260 = vpop.permute.xlu0 %259
          %263 = vset.pattern.permute.xlu0 0
          %264 = vperm.xlu0 %263, %v237
          %v265 = vpop.permute.xlu0 %264
          %268 = vset.pattern.permute.xlu0 0
          %269 = vperm.xlu0 %268, %v238
          %v270 = vpop.permute.xlu0 %269
          %273 = vset.pattern.permute.xlu0 0
          %274 = vperm.xlu0 %273, %v239
          %v275 = vpop.permute.xlu0 %274
          %278 = vset.pattern.permute.xlu0 0
          %279 = vperm.xlu0 %278, %v240
          %v280 = vpop.permute.xlu0 %279
          %283 = vset.pattern.permute.xlu0 0
          %284 = vperm.xlu0 %283, %v241
          %v285 = vpop.permute.xlu0 %284
          %288 = vset.pattern.permute.xlu0 0
          %289 = vperm.xlu0 %288, %v242
          %v290 = vpop.permute.xlu0 %289
          %293 = vset.pattern.permute.xlu0 0
          %294 = vperm.xlu0 %293, %v243
          %v295 = vpop.permute.xlu0 %294
          %298 = vset.pattern.permute.xlu0 0
          %299 = vperm.xlu0 %298, %v244
          %v300 = vpop.permute.xlu0 %299
          %303 = vset.pattern.permute.xlu0 0
          %304 = vperm.xlu0 %303, %v245
          %v305 = vpop.permute.xlu0 %304
          %308 = vset.pattern.permute.xlu0 0
          %309 = vperm.xlu0 %308, %v246
          %v310 = vpop.permute.xlu0 %309
          %313 = vset.pattern.permute.xlu0 0
          %314 = vperm.xlu0 %313, %v247
          %v315 = vpop.permute.xlu0 %314
          %318 = vset.pattern.permute.xlu0 0
          %319 = vperm.xlu0 %318, %v248
          %v320 = vpop.permute.xlu0 %319
          %323 = vset.pattern.permute.xlu0 0
          %324 = vperm.xlu0 %323, %v249
          %v325 = vpop.permute.xlu0 %324
          %328 = vset.pattern.permute.xlu0 0
          %329 = vperm.xlu0 %328, %v250
          %v330 = vpop.permute.xlu0 %329
          %v333 = vlaneseq
          %v334 = vshrl.u32 %v333, 7
          %v335 = vsub.s32 0, %v334
          %v336 = vrot.slane %v251, %v335
          %v338 = vmul.f32 %v255, %v336
          %v339 = vmul.f32 %v260, %v336
          %v340 = vmul.f32 %v265, %v336
          %v341 = vmul.f32 %v270, %v336
          %v342 = vmul.f32 %v275, %v336
          %v343 = vmul.f32 %v280, %v336
          %v344 = vmul.f32 %v285, %v336
          %v345 = vmul.f32 %v290, %v336
          %v346 = vmul.f32 %v295, %v336
          %v347 = vmul.f32 %v300, %v336
          %v348 = vmul.f32 %v305, %v336
          %v349 = vmul.f32 %v310, %v336
          %v350 = vmul.f32 %v315, %v336
          %v351 = vmul.f32 %v320, %v336
          %v352 = vmul.f32 %v325, %v336
          %v353 = vmul.f32 %v330, %v336
          %v354 = vmul.f32 %v338, 1.442695
          %v355 = vpow.pop %v354
          %v356 = vmul.f32 %v339, 1.442695
          %v357 = vpow.pop %v356
          %v358 = vmul.f32 %v340, 1.442695
          %v359 = vpow.pop %v358
          %v360 = vmul.f32 %v341, 1.442695
          %v361 = vpow.pop %v360
          %v362 = vmul.f32 %v342, 1.442695
          %v363 = vpow.pop %v362
          %v364 = vmul.f32 %v343, 1.442695
          %v365 = vpow.pop %v364
          %v366 = vmul.f32 %v344, 1.442695
          %v367 = vpow.pop %v366
          %v368 = vmul.f32 %v345, 1.442695
          %v369 = vpow.pop %v368
          %v370 = vmul.f32 %v346, 1.442695
          %v371 = vpow.pop %v370
          %v372 = vmul.f32 %v347, 1.442695
          %v373 = vpow.pop %v372
          %v374 = vmul.f32 %v348, 1.442695
          %v375 = vpow.pop %v374
          %v376 = vmul.f32 %v349, 1.442695
          %v377 = vpow.pop %v376
          %v378 = vmul.f32 %v350, 1.442695
          %v379 = vpow.pop %v378
          %v380 = vmul.f32 %v351, 1.442695
          %v381 = vpow.pop %v380
          %v382 = vmul.f32 %v352, 1.442695
          %v383 = vpow.pop %v382
          %v384 = vmul.f32 %v353, 1.442695
          %v385 = vpow.pop %v384
          %386 = vst [vmem:[#allocation2] sm:$0xff] %v355
          %387 = vst [vmem:[#allocation2 + $0x8] sm:$0xff] %v357
          %388 = vst [vmem:[#allocation2 + $0x10] sm:$0xff] %v359
          %389 = vst [vmem:[#allocation2 + $0x18] sm:$0xff] %v361
          %390 = vst [vmem:[#allocation2 + $0x20] sm:$0xff] %v363
          %391 = vst [vmem:[#allocation2 + $0x28] sm:$0xff] %v365
          %392 = vst [vmem:[#allocation2 + $0x30] sm:$0xff] %v367
          %393 = vst [vmem:[#allocation2 + $0x38] sm:$0xff] %v369
          %394 = vst [vmem:[#allocation2 + $0x40] sm:$0xff] %v371
          %395 = vst [vmem:[#allocation2 + $0x48] sm:$0xff] %v373
          %396 = vst [vmem:[#allocation2 + $0x50] sm:$0xff] %v375
          %397 = vst [vmem:[#allocation2 + $0x58] sm:$0xff] %v377
          %398 = vst [vmem:[#allocation2 + $0x60] sm:$0xff] %v379
          %399 = vst [vmem:[#allocation2 + $0x68] sm:$0xff] %v381
          %400 = vst [vmem:[#allocation2 + $0x70] sm:$0xff] %v383
          %401 = vst [vmem:[#allocation2 + $0x78] sm:$0xff] %v385
        $region40: #{tpu_custom_call.1} parent=31 // pred_fallthru
          _
        %v402 = vld [vmem:[%s195] sm:$0xff]
        %v403 = vld [vmem:[%s195 + $0x8] sm:$0xff]
        %v404 = vld [vmem:[%s195 + $0x10] sm:$0xff]
        %v405 = vld [vmem:[%s195 + $0x18] sm:$0xff]
        %v406 = vld [vmem:[%s195 + $0x20] sm:$0xff]
        %v407 = vld [vmem:[%s195 + $0x28] sm:$0xff]
        %v408 = vld [vmem:[%s195 + $0x30] sm:$0xff]
        %v409 = vld [vmem:[%s195 + $0x38] sm:$0xff]
        %v410 = vld [vmem:[%s195 + $0x40] sm:$0xff]
        %v411 = vld [vmem:[%s195 + $0x48] sm:$0xff]
        %v412 = vld [vmem:[%s195 + $0x50] sm:$0xff]
        %v413 = vld [vmem:[%s195 + $0x58] sm:$0xff]
        %v414 = vld [vmem:[%s195 + $0x60] sm:$0xff]
        %v415 = vld [vmem:[%s195 + $0x68] sm:$0xff]
        %v416 = vld [vmem:[%s195 + $0x70] sm:$0xff]
        %v417 = vld [vmem:[%s195 + $0x78] sm:$0xff]
        %v418 = vld [vmem:[#allocation2] sm:$0xff]
        %v419 = vld [vmem:[#allocation2 + $0x8] sm:$0xff]
        %v420 = vld [vmem:[#allocation2 + $0x10] sm:$0xff]
        %v421 = vld [vmem:[#allocation2 + $0x18] sm:$0xff]
        %v422 = vld [vmem:[#allocation2 + $0x20] sm:$0xff]
        %v423 = vld [vmem:[#allocation2 + $0x28] sm:$0xff]
        %v424 = vld [vmem:[#allocation2 + $0x30] sm:$0xff]
        %v425 = vld [vmem:[#allocation2 + $0x38] sm:$0xff]
        %v426 = vld [vmem:[#allocation2 + $0x40] sm:$0xff]
        %v427 = vld [vmem:[#allocation2 + $0x48] sm:$0xff]
        %v428 = vld [vmem:[#allocation2 + $0x50] sm:$0xff]
        %v429 = vld [vmem:[#allocation2 + $0x58] sm:$0xff]
        %v430 = vld [vmem:[#allocation2 + $0x60] sm:$0xff]
        %v431 = vld [vmem:[#allocation2 + $0x68] sm:$0xff]
        %v432 = vld [vmem:[#allocation2 + $0x70] sm:$0xff]
        %v433 = vld [vmem:[#allocation2 + $0x78] sm:$0xff]
        %v434 = vmul.f32 %v402, %v418
        %v435 = vmul.f32 %v403, %v419
        %v436 = vmul.f32 %v404, %v420
        %v437 = vmul.f32 %v405, %v421
        %v438 = vmul.f32 %v406, %v422
        %v439 = vmul.f32 %v407, %v423
        %v440 = vmul.f32 %v408, %v424
        %v441 = vmul.f32 %v409, %v425
        %v442 = vmul.f32 %v410, %v426
        %v443 = vmul.f32 %v411, %v427
        %v444 = vmul.f32 %v412, %v428
        %v445 = vmul.f32 %v413, %v429
        %v446 = vmul.f32 %v414, %v430
        %v447 = vmul.f32 %v415, %v431
        %v448 = vmul.f32 %v416, %v432
        %v449 = vmul.f32 %v417, %v433
        %450 = vst [vmem:[%s222] sm:$0xff] %v434
        %451 = vst [vmem:[%s222 + $0x8] sm:$0xff] %v435
        %452 = vst [vmem:[%s222 + $0x10] sm:$0xff] %v436
        %453 = vst [vmem:[%s222 + $0x18] sm:$0xff] %v437
        %454 = vst [vmem:[%s222 + $0x20] sm:$0xff] %v438
        %455 = vst [vmem:[%s222 + $0x28] sm:$0xff] %v439
        %456 = vst [vmem:[%s222 + $0x30] sm:$0xff] %v440
        %457 = vst [vmem:[%s222 + $0x38] sm:$0xff] %v441
        %458 = vst [vmem:[%s222 + $0x40] sm:$0xff] %v442
        %459 = vst [vmem:[%s222 + $0x48] sm:$0xff] %v443
        %460 = vst [vmem:[%s222 + $0x50] sm:$0xff] %v444
        %461 = vst [vmem:[%s222 + $0x58] sm:$0xff] %v445
        %462 = vst [vmem:[%s222 + $0x60] sm:$0xff] %v446
        %463 = vst [vmem:[%s222 + $0x68] sm:$0xff] %v447
        %464 = vst [vmem:[%s222 + $0x70] sm:$0xff] %v448
        %465 = vst [vmem:[%s222 + $0x78] sm:$0xff] %v449
        %s466 = sand.u32 %s117, 1
        %s467 = scalar_lea.sflag [#allocation5], %s466
        %s468 = sand.u32 %s117, 1
        %s469 = smul.addr %s468, 128
        %s470 = scalar_lea.vmem [#allocation6], %s469
        // Predicated region
        $region41: #{tpu_custom_call.1} parent=31 // pred_check
          %p471 = pneg %p127
        $region42: #{tpu_custom_call.1} parent=31 // pred_check_branch
          %473 = sbr.rel (%p471) target = $region44
        $region43: #{tpu_custom_call.1} parent=31 // pred_region
          %s474 = smul.u32 16, %s24
          %s476 = ssub.s32 2048, 2048
          %477 = vsyncadd %s467, %s476
          %s478 = smul.addr %s25, 32
          %s479 = sadd.s32 %s474, %s478
          %s480 = smul.addr %s479, 128
          %s481 = scalar_lea.hbm %s3, %s480
          %s482 = sshll.u32 %s470, 4
          %s483 = int_to_ptr.vmem [resolvable:$true] %s482
          %488 = dma.vmem_to_hbm [thread:$0]  %s483, 2048, %s481, %s467, 128, 128, 8
        $region44: #{tpu_custom_call.1} parent=31 // pred_fallthru
          _
      $region32: #{tpu_custom_call.1} parent=5 // pred_fallthru
        _
      %p489 = scmp.le.s32.totalorder 2, %s15
      // Predicated region
      $region45: #{tpu_custom_call.1} parent=5 // pred_check
        %p490 = pneg %p489
      $region46: #{tpu_custom_call.1} parent=5 // pred_check_branch
        %492 = sbr.rel (%p490) target = $region48
      $region47: #{tpu_custom_call.1} parent=5 // pred_region
        %s493 = ssub.s32 %s15, 2
        // Predicated region
        $region49: #{tpu_custom_call.1} parent=47 // pred_check
          %p494 = pneg %p133
        $region50: #{tpu_custom_call.1} parent=47 // pred_check_branch
          %496 = sbr.rel (%p494) target = $region52
        $region51: #{tpu_custom_call.1} parent=47 // pred_region
          %s497 = sand.u32 %s118, 1
          %s498 = scalar_lea.sflag [#allocation5], %s497
          %s499 = sand.u32 %s118, 1
          %s500 = smul.addr %s499, 128
          %s501 = scalar_lea.vmem [#allocation6], %s500
          %502 = dma.done %s498, 2048
        $region52: #{tpu_custom_call.1} parent=47 // pred_fallthru
          _
      $region48: #{tpu_custom_call.1} parent=5 // pred_fallthru
        _
    $region6: #{tpu_custom_call.1} parent=1 // loop_footer
      %s19 = sadd.s32 1, %s15
    $region7: #{tpu_custom_call.1} parent=1 // loop_footer_branch
      %14 = sbr.rel target = $region3
    $region8: #{tpu_custom_call.1} parent=1 // loop_exit
      _
    %503 = vsyncpa [#allocation4], 1
    %s504 = scalar_lea.sflag [#allocation4], 1
    %505 = vsyncpa %s504, 1
    %506 = vsyncpa [#allocation5], 1
    %s507 = scalar_lea.sflag [#allocation5], 1
    %508 = vsyncpa %s507, 1

</llo_original>
